<compile_context>
chip_gen: v6e
topology: v6e:2x2x1
jax: 0.10.0
libtpu: 0.0.40
codegen_flags: <defaults>
</compile_context>

<pallas_src>
import functools

import jax
import jax.numpy as jnp
import numpy as np
from jax.experimental import pallas as pl
from jax.experimental.pallas import tpu as pltpu

_LANE = 128
_TILE_QUANTUM = 4096        # 32 sublane-rows * 128 lanes -> dense (32m, 128) tiles
_MIN_TILE = 65536           # >= ~1.25 MiB HBM traffic per grid step
_MAX_TILE = 262144          # 256K elems/tile: ~10 MiB VMEM double-buffered
_N_TILES_TARGET = 8         # >= 2 so v7x megacore ("parallel") has work per TC
_CHUNK_ROWS = 32            # per-value footprint inside the kernel = 4 vregs


def _round_up(n, m):
    return (n + m - 1) // m * m


def _choose_tiling(batch, block_batch):
    """Pick (tile_batch, padded_batch, grid); tile_batch % 4096 == 0."""
    batch = max(int(batch), 1)
    whole = _round_up(batch, _TILE_QUANTUM)
    if block_batch is not None:
        tb = _round_up(int(block_batch), _TILE_QUANTUM)
        tb = min(tb, whole, _MAX_TILE)
    else:
        tb = _round_up(pl.cdiv(batch, _N_TILES_TARGET), _TILE_QUANTUM)
        tb = max(min(tb, _MAX_TILE), min(_MIN_TILE, whole))
    grid = pl.cdiv(batch, tb)
    # Rebalance so padding is < grid * 4096 instead of up to a whole tile.
    tb = _round_up(pl.cdiv(batch, grid), _TILE_QUANTUM)
    return tb, tb * grid, grid


def _mlp_kernel(w1_ref, b1_ref, w2_ref, b2_ref, x_ref, o_ref):
    """tanh(x @ W1 + b1) @ W2 + b2 on one dense batch tile.

    w1_ref: (in_dim, hidden) f32 SMEM   (scalar-broadcast operands)
    b1_ref: (hidden,)        f32 SMEM
    w2_ref: (hidden,)        f32 SMEM
    b2_ref: (1,)             f32 SMEM
    x_ref : (in_dim, R, 128) f32 VMEM   (batch on sublane/lane, R % 32 == 0)
    o_ref : (R, 128)         f32 VMEM   (dense output tile, unmasked stores)
    """
    in_dim, hidden = w1_ref.shape
    rows = x_ref.shape[1]
    num_chunks = rows // _CHUNK_ROWS

    def chunk(i, carry):
        s = pl.multiple_of(i * _CHUNK_ROWS, _CHUNK_ROWS)
        # Load the 4 feature rows of this 32x128 batch chunk once (16 vregs).
        xs = [x_ref[k, pl.ds(s, _CHUNK_ROWS), :] for k in range(in_dim)]
        acc = None
        for j in range(hidden):
            z = None
            for k in range(in_dim):
                term = w1_ref[k, j] * xs[k]          # SMEM-scalar broadcast MAC (VPU)
                z = term if z is None else z + term
            h = jnp.tanh(z + b1_ref[j])              # transcendental -> EUP
            c = w2_ref[j] * h
            acc = c if acc is None else acc + c
        o_ref[pl.ds(s, _CHUNK_ROWS), :] = (acc + b2_ref[0]).astype(o_ref.dtype)
        return carry

    jax.lax.fori_loop(0, num_chunks, chunk, 0)


@functools.partial(jax.jit, static_argnames=("block_batch",))
def distributed_net_forward(x, w1, b1, w2, b2, *, block_batch=None):
    """Pallas TPU equivalent of DistributedNet.forward.

    x : (B, input_size) float; w1 : (input_size, 10); b1 : (10,);
    w2 : (10, 1); b2 : (1,).  Returns (B, 1) float32.
    """
    batch, in_dim = x.shape
    hidden = w1.shape[1]

    tb, b_pad, grid = _choose_tiling(batch, block_batch)
    r = tb // _LANE                      # rows per tile (multiple of 32)
    m = b_pad // _LANE                   # total rows in the dense slab

    # Relayout: batch -> dense (M, 128) sublane/lane grid, features leading.
    # TODO(synk): one extra HBM pass; keep x pre-transposed upstream to avoid it.
    xp = jnp.pad(x.astype(jnp.float32), ((0, b_pad - batch), (0, 0)))
    xr = xp.reshape(m, _LANE, in_dim).transpose(2, 0, 1)       # (in_dim, M, 128)

    w1f = w1.astype(jnp.float32)
    b1f = b1.reshape(hidden).astype(jnp.float32)
    w2f = w2.reshape(hidden).astype(jnp.float32)
    b2f = b2.reshape(1).astype(jnp.float32)

    smem = pl.BlockSpec(memory_space=pltpu.MemorySpace.SMEM)

    out2d = pl.pallas_call(
        _mlp_kernel,
        out_shape=jax.ShapeDtypeStruct((m, _LANE), jnp.float32),
        grid=(grid,),
        in_specs=[
            smem,                                               # w1 (in_dim, hidden)
            smem,                                               # b1 (hidden,)
            smem,                                               # w2 (hidden,)
            smem,                                               # b2 (1,)
            pl.BlockSpec((in_dim, r, _LANE), lambda i: (0, i, 0)),   # x batch tile
        ],
        out_specs=pl.BlockSpec((r, _LANE), lambda i: (i, 0)),   # dense output tile
        compiler_params=pltpu.CompilerParams(
            dimension_semantics=("parallel",),
            vmem_limit_bytes=40 * 1024 * 1024,
        ),
    )(w1f, b1f, w2f, b2f, xr)

    return out2d.reshape(b_pad)[:batch].reshape(batch, 1)


if __name__ == "__main__":
    key = jax.random.PRNGKey(0)
    k_x, k_w1, k_b1, k_w2, k_b2, k_x2 = jax.random.split(key, 6)

    batch = 8
    input_size = 4
    hidden = 10

    # Deterministic parameter init (mimicking torch.nn.Linear uniform ranges).
    bound1 = 1.0 / np.sqrt(input_size)
    bound2 = 1.0 / np.sqrt(hidden)
    w1 = jax.random.uniform(k_w1, (input_size, hidden), jnp.float32, -bound1, bound1)
    b1 = jax.random.uniform(k_b1, (hidden,), jnp.float32, -bound1, bound1)
    w2 = jax.random.uniform(k_w2, (hidden, 1), jnp.float32, -bound2, bound2)
    b2 = jax.random.uniform(k_b2, (1,), jnp.float32, -bound2, bound2)

    def ref_fwd(xs):
        xs64 = np.asarray(xs, np.float64)
        return (np.tanh(xs64 @ np.asarray(w1, np.float64) + np.asarray(b1, np.float64))
                @ np.asarray(w2, np.float64) + np.asarray(b2, np.float64))

    # Small batch: single dense 4096-element tile (grid = 1).
    x = jax.random.normal(k_x, (batch, input_size), jnp.float32)
    out = jax.block_until_ready(distributed_net_forward(x, w1, b1, w2, b2))
    np.testing.assert_allclose(np.asarray(out), ref_fwd(x), rtol=1e-5, atol=1e-5)

    # Non-multiple-of-4096 batch with an explicit small tile: multi-step grid
    # (5 tiles) + tail padding, still dense (32m, 128) blocks.
    x2 = jax.random.normal(k_x2, (20000, input_size), jnp.float32)
    out2 = jax.block_until_ready(
        distributed_net_forward(x2, w1, b1, w2, b2, block_batch=4096))
    np.testing.assert_allclose(np.asarray(out2), ref_fwd(x2), rtol=1e-5, atol=1e-5)

    # TODO(synk): DistributedNet.controller() is host-side torch/numpy glue; no kernel needed.
    print("KERNEL_OK")
</pallas_src>

<mosaic_0001>
module attributes {stable_mosaic.version = 11 : i64} {
  func.func @_mlp_kernel(%arg0: i32, %arg1: memref<4x10xf32, #tpu.memory_space<smem>>, %arg2: memref<10xf32, #tpu.memory_space<smem>>, %arg3: memref<10xf32, #tpu.memory_space<smem>>, %arg4: memref<1xf32, #tpu.memory_space<smem>>, %arg5: memref<4x32x128xf32, #tpu.memory_space<vmem>>, %arg6: memref<32x128xf32, #tpu.memory_space<vmem>>) attributes {dimension_semantics = [#tpu.dimension_semantics<parallel>], iteration_bounds = array<i64: 1>, scalar_prefetch = 0 : i64, scratch_operands = 0 : i64, tpu.core_type = #tpu.core_type<tc>, window_params = [{transform_indices = @transform_0, window_bounds = array<i64: 4, 10>}, {transform_indices = @transform_1, window_bounds = array<i64: 10>}, {transform_indices = @transform_2, window_bounds = array<i64: 10>}, {transform_indices = @transform_3, window_bounds = array<i64: 1>}, {transform_indices = @transform_4, window_bounds = array<i64: 4, 32, 128>}, {transform_indices = @transform_5, window_bounds = array<i64: 32, 128>}]} {
    %c0_i32 = arith.constant 0 : i32
    %c32_i32 = arith.constant 32 : i32
    %0 = arith.muli %c0_i32, %c32_i32 : i32
    %1 = tpu.assume_multiple %0, 32 : i32
    %c0 = arith.constant 0 : index
    %2 = arith.index_cast %1 : i32 to index
    %c0_0 = arith.constant 0 : index
    %3 = vector.load %arg5[%c0, %2, %c0_0] : memref<4x32x128xf32, #tpu.memory_space<vmem>>, vector<1x32x128xf32>
    %4 = vector.shape_cast %3 : vector<1x32x128xf32> to vector<32x128xf32>
    %c1 = arith.constant 1 : index
    %5 = arith.index_cast %1 : i32 to index
    %c0_1 = arith.constant 0 : index
    %6 = vector.load %arg5[%c1, %5, %c0_1] : memref<4x32x128xf32, #tpu.memory_space<vmem>>, vector<1x32x128xf32>
    %7 = vector.shape_cast %6 : vector<1x32x128xf32> to vector<32x128xf32>
    %c2 = arith.constant 2 : index
    %8 = arith.index_cast %1 : i32 to index
    %c0_2 = arith.constant 0 : index
    %9 = vector.load %arg5[%c2, %8, %c0_2] : memref<4x32x128xf32, #tpu.memory_space<vmem>>, vector<1x32x128xf32>
    %10 = vector.shape_cast %9 : vector<1x32x128xf32> to vector<32x128xf32>
    %c3 = arith.constant 3 : index
    %11 = arith.index_cast %1 : i32 to index
    %c0_3 = arith.constant 0 : index
    %12 = vector.load %arg5[%c3, %11, %c0_3] : memref<4x32x128xf32, #tpu.memory_space<vmem>>, vector<1x32x128xf32>
    %13 = vector.shape_cast %12 : vector<1x32x128xf32> to vector<32x128xf32>
    %c0_4 = arith.constant 0 : index
    %c0_5 = arith.constant 0 : index
    %14 = memref.load %arg1[%c0_4, %c0_5] : memref<4x10xf32, #tpu.memory_space<smem>>
    %15 = vector.broadcast %14 : f32 to vector<32x128xf32>
    %16 = arith.mulf %15, %4 : vector<32x128xf32>
    %c1_6 = arith.constant 1 : index
    %c0_7 = arith.constant 0 : index
    %17 = memref.load %arg1[%c1_6, %c0_7] : memref<4x10xf32, #tpu.memory_space<smem>>
    %18 = vector.broadcast %17 : f32 to vector<32x128xf32>
    %19 = arith.mulf %18, %7 : vector<32x128xf32>
    %20 = arith.addf %16, %19 : vector<32x128xf32>
    %c2_8 = arith.constant 2 : index
    %c0_9 = arith.constant 0 : index
    %21 = memref.load %arg1[%c2_8, %c0_9] : memref<4x10xf32, #tpu.memory_space<smem>>
    %22 = vector.broadcast %21 : f32 to vector<32x128xf32>
    %23 = arith.mulf %22, %10 : vector<32x128xf32>
    %24 = arith.addf %20, %23 : vector<32x128xf32>
    %c3_10 = arith.constant 3 : index
    %c0_11 = arith.constant 0 : index
    %25 = memref.load %arg1[%c3_10, %c0_11] : memref<4x10xf32, #tpu.memory_space<smem>>
    %26 = vector.broadcast %25 : f32 to vector<32x128xf32>
    %27 = arith.mulf %26, %13 : vector<32x128xf32>
    %28 = arith.addf %24, %27 : vector<32x128xf32>
    %c0_12 = arith.constant 0 : index
    %29 = memref.load %arg2[%c0_12] : memref<10xf32, #tpu.memory_space<smem>>
    %30 = vector.broadcast %29 : f32 to vector<32x128xf32>
    %31 = arith.addf %28, %30 : vector<32x128xf32>
    %32 = math.tanh %31 : vector<32x128xf32>
    %c0_13 = arith.constant 0 : index
    %33 = memref.load %arg3[%c0_13] : memref<10xf32, #tpu.memory_space<smem>>
    %34 = vector.broadcast %33 : f32 to vector<32x128xf32>
    %35 = arith.mulf %34, %32 : vector<32x128xf32>
    %c0_14 = arith.constant 0 : index
    %c1_15 = arith.constant 1 : index
    %36 = memref.load %arg1[%c0_14, %c1_15] : memref<4x10xf32, #tpu.memory_space<smem>>
    %37 = vector.broadcast %36 : f32 to vector<32x128xf32>
    %38 = arith.mulf %37, %4 : vector<32x128xf32>
    %c1_16 = arith.constant 1 : index
    %c1_17 = arith.constant 1 : index
    %39 = memref.load %arg1[%c1_16, %c1_17] : memref<4x10xf32, #tpu.memory_space<smem>>
    %40 = vector.broadcast %39 : f32 to vector<32x128xf32>
    %41 = arith.mulf %40, %7 : vector<32x128xf32>
    %42 = arith.addf %38, %41 : vector<32x128xf32>
    %c2_18 = arith.constant 2 : index
    %c1_19 = arith.constant 1 : index
    %43 = memref.load %arg1[%c2_18, %c1_19] : memref<4x10xf32, #tpu.memory_space<smem>>
    %44 = vector.broadcast %43 : f32 to vector<32x128xf32>
    %45 = arith.mulf %44, %10 : vector<32x128xf32>
    %46 = arith.addf %42, %45 : vector<32x128xf32>
    %c3_20 = arith.constant 3 : index
    %c1_21 = arith.constant 1 : index
    %47 = memref.load %arg1[%c3_20, %c1_21] : memref<4x10xf32, #tpu.memory_space<smem>>
    %48 = vector.broadcast %47 : f32 to vector<32x128xf32>
    %49 = arith.mulf %48, %13 : vector<32x128xf32>
    %50 = arith.addf %46, %49 : vector<32x128xf32>
    %c1_22 = arith.constant 1 : index
    %51 = memref.load %arg2[%c1_22] : memref<10xf32, #tpu.memory_space<smem>>
    %52 = vector.broadcast %51 : f32 to vector<32x128xf32>
    %53 = arith.addf %50, %52 : vector<32x128xf32>
    %54 = math.tanh %53 : vector<32x128xf32>
    %c1_23 = arith.constant 1 : index
    %55 = memref.load %arg3[%c1_23] : memref<10xf32, #tpu.memory_space<smem>>
    %56 = vector.broadcast %55 : f32 to vector<32x128xf32>
    %57 = arith.mulf %56, %54 : vector<32x128xf32>
    %58 = arith.addf %35, %57 : vector<32x128xf32>
    %c0_24 = arith.constant 0 : index
    %c2_25 = arith.constant 2 : index
    %59 = memref.load %arg1[%c0_24, %c2_25] : memref<4x10xf32, #tpu.memory_space<smem>>
    %60 = vector.broadcast %59 : f32 to vector<32x128xf32>
    %61 = arith.mulf %60, %4 : vector<32x128xf32>
    %c1_26 = arith.constant 1 : index
    %c2_27 = arith.constant 2 : index
    %62 = memref.load %arg1[%c1_26, %c2_27] : memref<4x10xf32, #tpu.memory_space<smem>>
    %63 = vector.broadcast %62 : f32 to vector<32x128xf32>
    %64 = arith.mulf %63, %7 : vector<32x128xf32>
    %65 = arith.addf %61, %64 : vector<32x128xf32>
    %c2_28 = arith.constant 2 : index
    %c2_29 = arith.constant 2 : index
    %66 = memref.load %arg1[%c2_28, %c2_29] : memref<4x10xf32, #tpu.memory_space<smem>>
    %67 = vector.broadcast %66 : f32 to vector<32x128xf32>
    %68 = arith.mulf %67, %10 : vector<32x128xf32>
    %69 = arith.addf %65, %68 : vector<32x128xf32>
    %c3_30 = arith.constant 3 : index
    %c2_31 = arith.constant 2 : index
    %70 = memref.load %arg1[%c3_30, %c2_31] : memref<4x10xf32, #tpu.memory_space<smem>>
    %71 = vector.broadcast %70 : f32 to vector<32x128xf32>
    %72 = arith.mulf %71, %13 : vector<32x128xf32>
    %73 = arith.addf %69, %72 : vector<32x128xf32>
    %c2_32 = arith.constant 2 : index
    %74 = memref.load %arg2[%c2_32] : memref<10xf32, #tpu.memory_space<smem>>
    %75 = vector.broadcast %74 : f32 to vector<32x128xf32>
    %76 = arith.addf %73, %75 : vector<32x128xf32>
    %77 = math.tanh %76 : vector<32x128xf32>
    %c2_33 = arith.constant 2 : index
    %78 = memref.load %arg3[%c2_33] : memref<10xf32, #tpu.memory_space<smem>>
    %79 = vector.broadcast %78 : f32 to vector<32x128xf32>
    %80 = arith.mulf %79, %77 : vector<32x128xf32>
    %81 = arith.addf %58, %80 : vector<32x128xf32>
    %c0_34 = arith.constant 0 : index
    %c3_35 = arith.constant 3 : index
    %82 = memref.load %arg1[%c0_34, %c3_35] : memref<4x10xf32, #tpu.memory_space<smem>>
    %83 = vector.broadcast %82 : f32 to vector<32x128xf32>
    %84 = arith.mulf %83, %4 : vector<32x128xf32>
    %c1_36 = arith.constant 1 : index
    %c3_37 = arith.constant 3 : index
    %85 = memref.load %arg1[%c1_36, %c3_37] : memref<4x10xf32, #tpu.memory_space<smem>>
    %86 = vector.broadcast %85 : f32 to vector<32x128xf32>
    %87 = arith.mulf %86, %7 : vector<32x128xf32>
    %88 = arith.addf %84, %87 : vector<32x128xf32>
    %c2_38 = arith.constant 2 : index
    %c3_39 = arith.constant 3 : index
    %89 = memref.load %arg1[%c2_38, %c3_39] : memref<4x10xf32, #tpu.memory_space<smem>>
    %90 = vector.broadcast %89 : f32 to vector<32x128xf32>
    %91 = arith.mulf %90, %10 : vector<32x128xf32>
    %92 = arith.addf %88, %91 : vector<32x128xf32>
    %c3_40 = arith.constant 3 : index
    %c3_41 = arith.constant 3 : index
    %93 = memref.load %arg1[%c3_40, %c3_41] : memref<4x10xf32, #tpu.memory_space<smem>>
    %94 = vector.broadcast %93 : f32 to vector<32x128xf32>
    %95 = arith.mulf %94, %13 : vector<32x128xf32>
    %96 = arith.addf %92, %95 : vector<32x128xf32>
    %c3_42 = arith.constant 3 : index
    %97 = memref.load %arg2[%c3_42] : memref<10xf32, #tpu.memory_space<smem>>
    %98 = vector.broadcast %97 : f32 to vector<32x128xf32>
    %99 = arith.addf %96, %98 : vector<32x128xf32>
    %100 = math.tanh %99 : vector<32x128xf32>
    %c3_43 = arith.constant 3 : index
    %101 = memref.load %arg3[%c3_43] : memref<10xf32, #tpu.memory_space<smem>>
    %102 = vector.broadcast %101 : f32 to vector<32x128xf32>
    %103 = arith.mulf %102, %100 : vector<32x128xf32>
    %104 = arith.addf %81, %103 : vector<32x128xf32>
    %c0_44 = arith.constant 0 : index
    %c4 = arith.constant 4 : index
    %105 = memref.load %arg1[%c0_44, %c4] : memref<4x10xf32, #tpu.memory_space<smem>>
    %106 = vector.broadcast %105 : f32 to vector<32x128xf32>
    %107 = arith.mulf %106, %4 : vector<32x128xf32>
    %c1_45 = arith.constant 1 : index
    %c4_46 = arith.constant 4 : index
    %108 = memref.load %arg1[%c1_45, %c4_46] : memref<4x10xf32, #tpu.memory_space<smem>>
    %109 = vector.broadcast %108 : f32 to vector<32x128xf32>
    %110 = arith.mulf %109, %7 : vector<32x128xf32>
    %111 = arith.addf %107, %110 : vector<32x128xf32>
    %c2_47 = arith.constant 2 : index
    %c4_48 = arith.constant 4 : index
    %112 = memref.load %arg1[%c2_47, %c4_48] : memref<4x10xf32, #tpu.memory_space<smem>>
    %113 = vector.broadcast %112 : f32 to vector<32x128xf32>
    %114 = arith.mulf %113, %10 : vector<32x128xf32>
    %115 = arith.addf %111, %114 : vector<32x128xf32>
    %c3_49 = arith.constant 3 : index
    %c4_50 = arith.constant 4 : index
    %116 = memref.load %arg1[%c3_49, %c4_50] : memref<4x10xf32, #tpu.memory_space<smem>>
    %117 = vector.broadcast %116 : f32 to vector<32x128xf32>
    %118 = arith.mulf %117, %13 : vector<32x128xf32>
    %119 = arith.addf %115, %118 : vector<32x128xf32>
    %c4_51 = arith.constant 4 : index
    %120 = memref.load %arg2[%c4_51] : memref<10xf32, #tpu.memory_space<smem>>
    %121 = vector.broadcast %120 : f32 to vector<32x128xf32>
    %122 = arith.addf %119, %121 : vector<32x128xf32>
    %123 = math.tanh %122 : vector<32x128xf32>
    %c4_52 = arith.constant 4 : index
    %124 = memref.load %arg3[%c4_52] : memref<10xf32, #tpu.memory_space<smem>>
    %125 = vector.broadcast %124 : f32 to vector<32x128xf32>
    %126 = arith.mulf %125, %123 : vector<32x128xf32>
    %127 = arith.addf %104, %126 : vector<32x128xf32>
    %c0_53 = arith.constant 0 : index
    %c5 = arith.constant 5 : index
    %128 = memref.load %arg1[%c0_53, %c5] : memref<4x10xf32, #tpu.memory_space<smem>>
    %129 = vector.broadcast %128 : f32 to vector<32x128xf32>
    %130 = arith.mulf %129, %4 : vector<32x128xf32>
    %c1_54 = arith.constant 1 : index
    %c5_55 = arith.constant 5 : index
    %131 = memref.load %arg1[%c1_54, %c5_55] : memref<4x10xf32, #tpu.memory_space<smem>>
    %132 = vector.broadcast %131 : f32 to vector<32x128xf32>
    %133 = arith.mulf %132, %7 : vector<32x128xf32>
    %134 = arith.addf %130, %133 : vector<32x128xf32>
    %c2_56 = arith.constant 2 : index
    %c5_57 = arith.constant 5 : index
    %135 = memref.load %arg1[%c2_56, %c5_57] : memref<4x10xf32, #tpu.memory_space<smem>>
    %136 = vector.broadcast %135 : f32 to vector<32x128xf32>
    %137 = arith.mulf %136, %10 : vector<32x128xf32>
    %138 = arith.addf %134, %137 : vector<32x128xf32>
    %c3_58 = arith.constant 3 : index
    %c5_59 = arith.constant 5 : index
    %139 = memref.load %arg1[%c3_58, %c5_59] : memref<4x10xf32, #tpu.memory_space<smem>>
    %140 = vector.broadcast %139 : f32 to vector<32x128xf32>
    %141 = arith.mulf %140, %13 : vector<32x128xf32>
    %142 = arith.addf %138, %141 : vector<32x128xf32>
    %c5_60 = arith.constant 5 : index
    %143 = memref.load %arg2[%c5_60] : memref<10xf32, #tpu.memory_space<smem>>
    %144 = vector.broadcast %143 : f32 to vector<32x128xf32>
    %145 = arith.addf %142, %144 : vector<32x128xf32>
    %146 = math.tanh %145 : vector<32x128xf32>
    %c5_61 = arith.constant 5 : index
    %147 = memref.load %arg3[%c5_61] : memref<10xf32, #tpu.memory_space<smem>>
    %148 = vector.broadcast %147 : f32 to vector<32x128xf32>
    %149 = arith.mulf %148, %146 : vector<32x128xf32>
    %150 = arith.addf %127, %149 : vector<32x128xf32>
    %c0_62 = arith.constant 0 : index
    %c6 = arith.constant 6 : index
    %151 = memref.load %arg1[%c0_62, %c6] : memref<4x10xf32, #tpu.memory_space<smem>>
    %152 = vector.broadcast %151 : f32 to vector<32x128xf32>
    %153 = arith.mulf %152, %4 : vector<32x128xf32>
    %c1_63 = arith.constant 1 : index
    %c6_64 = arith.constant 6 : index
    %154 = memref.load %arg1[%c1_63, %c6_64] : memref<4x10xf32, #tpu.memory_space<smem>>
    %155 = vector.broadcast %154 : f32 to vector<32x128xf32>
    %156 = arith.mulf %155, %7 : vector<32x128xf32>
    %157 = arith.addf %153, %156 : vector<32x128xf32>
    %c2_65 = arith.constant 2 : index
    %c6_66 = arith.constant 6 : index
    %158 = memref.load %arg1[%c2_65, %c6_66] : memref<4x10xf32, #tpu.memory_space<smem>>
    %159 = vector.broadcast %158 : f32 to vector<32x128xf32>
    %160 = arith.mulf %159, %10 : vector<32x128xf32>
    %161 = arith.addf %157, %160 : vector<32x128xf32>
    %c3_67 = arith.constant 3 : index
    %c6_68 = arith.constant 6 : index
    %162 = memref.load %arg1[%c3_67, %c6_68] : memref<4x10xf32, #tpu.memory_space<smem>>
    %163 = vector.broadcast %162 : f32 to vector<32x128xf32>
    %164 = arith.mulf %163, %13 : vector<32x128xf32>
    %165 = arith.addf %161, %164 : vector<32x128xf32>
    %c6_69 = arith.constant 6 : index
    %166 = memref.load %arg2[%c6_69] : memref<10xf32, #tpu.memory_space<smem>>
    %167 = vector.broadcast %166 : f32 to vector<32x128xf32>
    %168 = arith.addf %165, %167 : vector<32x128xf32>
    %169 = math.tanh %168 : vector<32x128xf32>
    %c6_70 = arith.constant 6 : index
    %170 = memref.load %arg3[%c6_70] : memref<10xf32, #tpu.memory_space<smem>>
    %171 = vector.broadcast %170 : f32 to vector<32x128xf32>
    %172 = arith.mulf %171, %169 : vector<32x128xf32>
    %173 = arith.addf %150, %172 : vector<32x128xf32>
    %c0_71 = arith.constant 0 : index
    %c7 = arith.constant 7 : index
    %174 = memref.load %arg1[%c0_71, %c7] : memref<4x10xf32, #tpu.memory_space<smem>>
    %175 = vector.broadcast %174 : f32 to vector<32x128xf32>
    %176 = arith.mulf %175, %4 : vector<32x128xf32>
    %c1_72 = arith.constant 1 : index
    %c7_73 = arith.constant 7 : index
    %177 = memref.load %arg1[%c1_72, %c7_73] : memref<4x10xf32, #tpu.memory_space<smem>>
    %178 = vector.broadcast %177 : f32 to vector<32x128xf32>
    %179 = arith.mulf %178, %7 : vector<32x128xf32>
    %180 = arith.addf %176, %179 : vector<32x128xf32>
    %c2_74 = arith.constant 2 : index
    %c7_75 = arith.constant 7 : index
    %181 = memref.load %arg1[%c2_74, %c7_75] : memref<4x10xf32, #tpu.memory_space<smem>>
    %182 = vector.broadcast %181 : f32 to vector<32x128xf32>
    %183 = arith.mulf %182, %10 : vector<32x128xf32>
    %184 = arith.addf %180, %183 : vector<32x128xf32>
    %c3_76 = arith.constant 3 : index
    %c7_77 = arith.constant 7 : index
    %185 = memref.load %arg1[%c3_76, %c7_77] : memref<4x10xf32, #tpu.memory_space<smem>>
    %186 = vector.broadcast %185 : f32 to vector<32x128xf32>
    %187 = arith.mulf %186, %13 : vector<32x128xf32>
    %188 = arith.addf %184, %187 : vector<32x128xf32>
    %c7_78 = arith.constant 7 : index
    %189 = memref.load %arg2[%c7_78] : memref<10xf32, #tpu.memory_space<smem>>
    %190 = vector.broadcast %189 : f32 to vector<32x128xf32>
    %191 = arith.addf %188, %190 : vector<32x128xf32>
    %192 = math.tanh %191 : vector<32x128xf32>
    %c7_79 = arith.constant 7 : index
    %193 = memref.load %arg3[%c7_79] : memref<10xf32, #tpu.memory_space<smem>>
    %194 = vector.broadcast %193 : f32 to vector<32x128xf32>
    %195 = arith.mulf %194, %192 : vector<32x128xf32>
    %196 = arith.addf %173, %195 : vector<32x128xf32>
    %c0_80 = arith.constant 0 : index
    %c8 = arith.constant 8 : index
    %197 = memref.load %arg1[%c0_80, %c8] : memref<4x10xf32, #tpu.memory_space<smem>>
    %198 = vector.broadcast %197 : f32 to vector<32x128xf32>
    %199 = arith.mulf %198, %4 : vector<32x128xf32>
    %c1_81 = arith.constant 1 : index
    %c8_82 = arith.constant 8 : index
    %200 = memref.load %arg1[%c1_81, %c8_82] : memref<4x10xf32, #tpu.memory_space<smem>>
    %201 = vector.broadcast %200 : f32 to vector<32x128xf32>
    %202 = arith.mulf %201, %7 : vector<32x128xf32>
    %203 = arith.addf %199, %202 : vector<32x128xf32>
    %c2_83 = arith.constant 2 : index
    %c8_84 = arith.constant 8 : index
    %204 = memref.load %arg1[%c2_83, %c8_84] : memref<4x10xf32, #tpu.memory_space<smem>>
    %205 = vector.broadcast %204 : f32 to vector<32x128xf32>
    %206 = arith.mulf %205, %10 : vector<32x128xf32>
    %207 = arith.addf %203, %206 : vector<32x128xf32>
    %c3_85 = arith.constant 3 : index
    %c8_86 = arith.constant 8 : index
    %208 = memref.load %arg1[%c3_85, %c8_86] : memref<4x10xf32, #tpu.memory_space<smem>>
    %209 = vector.broadcast %208 : f32 to vector<32x128xf32>
    %210 = arith.mulf %209, %13 : vector<32x128xf32>
    %211 = arith.addf %207, %210 : vector<32x128xf32>
    %c8_87 = arith.constant 8 : index
    %212 = memref.load %arg2[%c8_87] : memref<10xf32, #tpu.memory_space<smem>>
    %213 = vector.broadcast %212 : f32 to vector<32x128xf32>
    %214 = arith.addf %211, %213 : vector<32x128xf32>
    %215 = math.tanh %214 : vector<32x128xf32>
    %c8_88 = arith.constant 8 : index
    %216 = memref.load %arg3[%c8_88] : memref<10xf32, #tpu.memory_space<smem>>
    %217 = vector.broadcast %216 : f32 to vector<32x128xf32>
    %218 = arith.mulf %217, %215 : vector<32x128xf32>
    %219 = arith.addf %196, %218 : vector<32x128xf32>
    %c0_89 = arith.constant 0 : index
    %c9 = arith.constant 9 : index
    %220 = memref.load %arg1[%c0_89, %c9] : memref<4x10xf32, #tpu.memory_space<smem>>
    %221 = vector.broadcast %220 : f32 to vector<32x128xf32>
    %222 = arith.mulf %221, %4 : vector<32x128xf32>
    %c1_90 = arith.constant 1 : index
    %c9_91 = arith.constant 9 : index
    %223 = memref.load %arg1[%c1_90, %c9_91] : memref<4x10xf32, #tpu.memory_space<smem>>
    %224 = vector.broadcast %223 : f32 to vector<32x128xf32>
    %225 = arith.mulf %224, %7 : vector<32x128xf32>
    %226 = arith.addf %222, %225 : vector<32x128xf32>
    %c2_92 = arith.constant 2 : index
    %c9_93 = arith.constant 9 : index
    %227 = memref.load %arg1[%c2_92, %c9_93] : memref<4x10xf32, #tpu.memory_space<smem>>
    %228 = vector.broadcast %227 : f32 to vector<32x128xf32>
    %229 = arith.mulf %228, %10 : vector<32x128xf32>
    %230 = arith.addf %226, %229 : vector<32x128xf32>
    %c3_94 = arith.constant 3 : index
    %c9_95 = arith.constant 9 : index
    %231 = memref.load %arg1[%c3_94, %c9_95] : memref<4x10xf32, #tpu.memory_space<smem>>
    %232 = vector.broadcast %231 : f32 to vector<32x128xf32>
    %233 = arith.mulf %232, %13 : vector<32x128xf32>
    %234 = arith.addf %230, %233 : vector<32x128xf32>
    %c9_96 = arith.constant 9 : index
    %235 = memref.load %arg2[%c9_96] : memref<10xf32, #tpu.memory_space<smem>>
    %236 = vector.broadcast %235 : f32 to vector<32x128xf32>
    %237 = arith.addf %234, %236 : vector<32x128xf32>
    %238 = math.tanh %237 : vector<32x128xf32>
    %c9_97 = arith.constant 9 : index
    %239 = memref.load %arg3[%c9_97] : memref<10xf32, #tpu.memory_space<smem>>
    %240 = vector.broadcast %239 : f32 to vector<32x128xf32>
    %241 = arith.mulf %240, %238 : vector<32x128xf32>
    %242 = arith.addf %219, %241 : vector<32x128xf32>
    %c0_98 = arith.constant 0 : index
    %243 = memref.load %arg4[%c0_98] : memref<1xf32, #tpu.memory_space<smem>>
    %244 = vector.broadcast %243 : f32 to vector<32x128xf32>
    %245 = arith.addf %242, %244 : vector<32x128xf32>
    %246 = arith.index_cast %1 : i32 to index
    %c0_99 = arith.constant 0 : index
    %247 = vector.load %arg6[%246, %c0_99] : memref<32x128xf32, #tpu.memory_space<vmem>>, vector<32x128xf32>
    tpu.vector_store %arg6[%246, %c0_99], %245 {strides = array<i32>} : memref<32x128xf32, #tpu.memory_space<vmem>>, vector<32x128xf32>,
    %c1_i32 = arith.constant 1 : i32
    return
  }
  func.func @transform_0(%arg0: i32) -> (i32, i32) {
    %c0_i32 = arith.constant 0 : i32
    %c0_i32_0 = arith.constant 0 : i32
    %c0_i32_1 = arith.constant 0 : i32
    return %c0_i32, %c0_i32_0 : i32, i32
  }
  func.func @transform_1(%arg0: i32) -> i32 {
    %c0_i32 = arith.constant 0 : i32
    %c0_i32_0 = arith.constant 0 : i32
    return %c0_i32 : i32
  }
  func.func @transform_2(%arg0: i32) -> i32 {
    %c0_i32 = arith.constant 0 : i32
    %c0_i32_0 = arith.constant 0 : i32
    return %c0_i32 : i32
  }
  func.func @transform_3(%arg0: i32) -> i32 {
    %c0_i32 = arith.constant 0 : i32
    %c0_i32_0 = arith.constant 0 : i32
    return %c0_i32 : i32
  }
  func.func @transform_4(%arg0: i32) -> (i32, i32, i32) {
    %c0_i32 = arith.constant 0 : i32
    %c0_i32_0 = arith.constant 0 : i32
    %c0_i32_1 = arith.constant 0 : i32
    return %c0_i32, %arg0, %c0_i32_0 : i32, i32, i32
  }
  func.func @transform_5(%arg0: i32) -> (i32, i32) {
    %c0_i32 = arith.constant 0 : i32
    %c0_i32_0 = arith.constant 0 : i32
    return %arg0, %c0_i32 : i32, i32
  }
}

</mosaic_0001>

<llo_original>
// kernel: distributed_net_forward.1
$region0: #{distributed_net_forward.1}
  #allocation0 [shape = 'u32[]', space=smem, size = 0x4, offset = 0x4, fixed_abs, tag = 'smem constant byte address 0x4 - core index']
  #allocation1 [shape = 'u32[144,128]{1,0:T(1,128)}', space=vmem, size = 0x12000, scoped, tag = 'internal scratch']
  #allocation2 [shape = 'f32[1]{0:T(128)S(6)}', space=smem, size = 0x200, scoped, tag = 'scoped memory for distributed_net_forward.1']
  %s0 = inlined_call_operand.vmem [shape: f32[4,10], index: 0, kind: input, shape index: {}]
  %s1 = inlined_call_operand.vmem [shape: f32[10], index: 1, kind: input, shape index: {}]
  %s2 = inlined_call_operand.vmem [shape: f32[10], index: 2, kind: input, shape index: {}]
  %s3 = inlined_call_operand.<no memory space> [shape: f32[1], index: 3, kind: input, shape index: {}]
  %s4 = inlined_call_operand.vmem [shape: f32[4,32,128], index: 4, kind: input, shape index: {}]
  %s5 = inlined_call_operand.vmem [shape: f32[32,128], index: 5, kind: output, shape index: {}]
  %s6 = sld [smem:[#allocation0]]
  $region42: #{distributed_net_forward.1} parent=0
    _
  %s8 = ssub.s32 1, %s6
  %s9 = scalar_select 0, %s8, %s6
  %10 = sst [smem:[#allocation2]] %s3
  $region1: #{distributed_net_forward.1} parent=0
    #allocation3 [shape = 'u8[2048]{0}', space=smem, size = 0x800, scoped, tag = 'input window, operand 0, single buffered']
    #allocation4 [shape = 's32[1]{0}', space=sflag, size = 0x4, scoped, tag = 'scoped memory for distributed_net_forward.1']
    #allocation5 [shape = 'u8[512]{0}', space=smem, size = 0x200, scoped, tag = 'input window, operand 1, single buffered']
    #allocation6 [shape = 's32[1]{0}', space=sflag, size = 0x4, scoped, tag = 'scoped memory for distributed_net_forward.1']
    #allocation7 [shape = 'u8[512]{0}', space=smem, size = 0x200, scoped, tag = 'input window, operand 2, single buffered']
    %11 = vsyncpa [#allocation4], 0
    %12 = vsyncpa [#allocation6], 0
    // Predicated region
    $region2: #{distributed_net_forward.1} parent=1 // pred_check
      _
    $region3: #{distributed_net_forward.1} parent=1 // pred_check_branch
      %14 = sbr.rel (0) target = $region5
    $region4: #{distributed_net_forward.1} parent=1 // pred_region
      %s16 = ssub.s32 64, 64
      %17 = vsyncadd [#allocation4], %s16
      %s19 = sshll.u32 %s0, 4
      %s20 = int_to_ptr.vmem [resolvable:$true] %s19
      %22 = dma.vmem_to_smem %s20, 64, [#allocation3], [#allocation4]
    $region5: #{distributed_net_forward.1} parent=1 // pred_fallthru
      _
    // Predicated region
    $region6: #{distributed_net_forward.1} parent=1 // pred_check
      _
    $region7: #{distributed_net_forward.1} parent=1 // pred_check_branch
      %24 = sbr.rel (0) target = $region9
    $region8: #{distributed_net_forward.1} parent=1 // pred_region
      %s26 = ssub.s32 16, 16
      %27 = vsyncadd [#allocation6], %s26
      %s29 = sshll.u32 %s1, 4
      %s30 = int_to_ptr.vmem [resolvable:$true] %s29
      %32 = dma.vmem_to_smem %s30, 16, [#allocation5], [#allocation6]
    $region9: #{distributed_net_forward.1} parent=1 // pred_fallthru
      _
    // Predicated region
    $region10: #{distributed_net_forward.1} parent=1 // pred_check
      _
    $region11: #{distributed_net_forward.1} parent=1 // pred_check_branch
      %34 = sbr.rel (0) target = $region13
    $region12: #{distributed_net_forward.1} parent=1 // pred_region
      %s36 = ssub.s32 16, 16
      %37 = vsyncadd [#allocation6], %s36
      %s39 = sshll.u32 %s2, 4
      %s40 = int_to_ptr.vmem [resolvable:$true] %s39
      %42 = dma.vmem_to_smem %s40, 16, [#allocation7], [#allocation6]
    $region13: #{distributed_net_forward.1} parent=1 // pred_fallthru
      _
    // Predicated region
    $region14: #{distributed_net_forward.1} parent=1 // pred_check
      _
    $region15: #{distributed_net_forward.1} parent=1 // pred_check_branch
      %44 = sbr.rel (0) target = $region17
    $region16: #{distributed_net_forward.1} parent=1 // pred_region
      _
    $region17: #{distributed_net_forward.1} parent=1 // pred_fallthru
      _
    // Predicated region
    $region18: #{distributed_net_forward.1} parent=1 // pred_check
      _
    $region19: #{distributed_net_forward.1} parent=1 // pred_check_branch
      %46 = sbr.rel (0) target = $region21
    $region20: #{distributed_net_forward.1} parent=1 // pred_region
      _
    $region21: #{distributed_net_forward.1} parent=1 // pred_fallthru
      _
    // Predicated region
    $region22: #{distributed_net_forward.1} parent=1 // pred_check
      _
    $region23: #{distributed_net_forward.1} parent=1 // pred_check_branch
      %48 = sbr.rel (0) target = $region25
    $region24: #{distributed_net_forward.1} parent=1 // pred_region
      %49 = dma.done [#allocation4], 64
    $region25: #{distributed_net_forward.1} parent=1 // pred_fallthru
      _
    // Predicated region
    $region26: #{distributed_net_forward.1} parent=1 // pred_check
      _
    $region27: #{distributed_net_forward.1} parent=1 // pred_check_branch
      %51 = sbr.rel (0) target = $region29
    $region28: #{distributed_net_forward.1} parent=1 // pred_region
      %52 = dma.done [#allocation6], 16
    $region29: #{distributed_net_forward.1} parent=1 // pred_fallthru
      _
    // Predicated region
    $region30: #{distributed_net_forward.1} parent=1 // pred_check
      _
    $region31: #{distributed_net_forward.1} parent=1 // pred_check_branch
      %54 = sbr.rel (0) target = $region33
    $region32: #{distributed_net_forward.1} parent=1 // pred_region
      %55 = dma.done [#allocation6], 16
    $region33: #{distributed_net_forward.1} parent=1 // pred_fallthru
      _
    %56 = sfence
    %v57 = vld [vmem:[%s4] sm:$0xff]
    %v58 = vld [vmem:[%s4 + $0x8] sm:$0xff]
    %v59 = vld [vmem:[%s4 + $0x10] sm:$0xff]
    %v60 = vld [vmem:[%s4 + $0x18] sm:$0xff]
    %s61 = sadd.s32 0, 32
    %s62 = scalar_lea.vmem %s4, %s61
    %v63 = vld [vmem:[%s62] sm:$0xff]
    %v64 = vld [vmem:[%s62 + $0x8] sm:$0xff]
    %v65 = vld [vmem:[%s62 + $0x10] sm:$0xff]
    %v66 = vld [vmem:[%s62 + $0x18] sm:$0xff]
    %s67 = sadd.s32 0, 64
    %s68 = scalar_lea.vmem %s4, %s67
    %v69 = vld [vmem:[%s68] sm:$0xff]
    %v70 = vld [vmem:[%s68 + $0x8] sm:$0xff]
    %v71 = vld [vmem:[%s68 + $0x10] sm:$0xff]
    %v72 = vld [vmem:[%s68 + $0x18] sm:$0xff]
    %s73 = sadd.s32 0, 96
    %s74 = scalar_lea.vmem %s4, %s73
    %v75 = vld [vmem:[%s74] sm:$0xff]
    %v76 = vld [vmem:[%s74 + $0x8] sm:$0xff]
    %v77 = vld [vmem:[%s74 + $0x10] sm:$0xff]
    %v78 = vld [vmem:[%s74 + $0x18] sm:$0xff]
    %s79 = sld [smem:[#allocation3]]
    %v80 = vstv %s79
    %v81 = vmul.f32 %v80, %v57
    %v82 = vmul.f32 %v80, %v58
    %v83 = vmul.f32 %v80, %v59
    %v84 = vmul.f32 %v80, %v60
    %s85 = sld [smem:[#allocation3 + $0x80]]
    %v86 = vstv %s85
    %v87 = vmul.f32 %v86, %v63
    %v88 = vmul.f32 %v86, %v64
    %v89 = vmul.f32 %v86, %v65
    %v90 = vmul.f32 %v86, %v66
    %v91 = vadd.f32 %v81, %v87
    %v92 = vadd.f32 %v82, %v88
    %v93 = vadd.f32 %v83, %v89
    %v94 = vadd.f32 %v84, %v90
    %s95 = sld [smem:[#allocation3 + $0x100]]
    %v96 = vstv %s95
    %v97 = vmul.f32 %v96, %v69
    %v98 = vmul.f32 %v96, %v70
    %v99 = vmul.f32 %v96, %v71
    %v100 = vmul.f32 %v96, %v72
    %v101 = vadd.f32 %v91, %v97
    %v102 = vadd.f32 %v92, %v98
    %v103 = vadd.f32 %v93, %v99
    %v104 = vadd.f32 %v94, %v100
    %s105 = sld [smem:[#allocation3 + $0x180]]
    %v106 = vstv %s105
    %v107 = vmul.f32 %v106, %v75
    %v108 = vmul.f32 %v106, %v76
    %v109 = vmul.f32 %v106, %v77
    %v110 = vmul.f32 %v106, %v78
    %v111 = vadd.f32 %v101, %v107
    %v112 = vadd.f32 %v102, %v108
    %v113 = vadd.f32 %v103, %v109
    %v114 = vadd.f32 %v104, %v110
    %s115 = sld [smem:[#allocation5]]
    %v116 = vstv %s115
    %v117 = vadd.f32 %v111, %v116
    %v118 = vadd.f32 %v112, %v116
    %v119 = vadd.f32 %v113, %v116
    %v120 = vadd.f32 %v114, %v116
    %v121 = vtanh.pop %v117
    %v122 = vtanh.pop %v118
    %v123 = vtanh.pop %v119
    %v124 = vtanh.pop %v120
    %s125 = sld [smem:[#allocation7]]
    %v126 = vstv %s125
    %v127 = vmul.f32 %v126, %v121
    %v128 = vmul.f32 %v126, %v122
    %v129 = vmul.f32 %v126, %v123
    %v130 = vmul.f32 %v126, %v124
    %s131 = sld [smem:[#allocation3 + $0x1]]
    %v132 = vstv %s131
    %v133 = vmul.f32 %v132, %v57
    %v134 = vmul.f32 %v132, %v58
    %v135 = vmul.f32 %v132, %v59
    %v136 = vmul.f32 %v132, %v60
    %s137 = sld [smem:[#allocation3 + $0x81]]
    %v138 = vstv %s137
    %v139 = vmul.f32 %v138, %v63
    %v140 = vmul.f32 %v138, %v64
    %v141 = vmul.f32 %v138, %v65
    %v142 = vmul.f32 %v138, %v66
    %v143 = vadd.f32 %v133, %v139
    %v144 = vadd.f32 %v134, %v140
    %v145 = vadd.f32 %v135, %v141
    %v146 = vadd.f32 %v136, %v142
    %s147 = sld [smem:[#allocation3 + $0x101]]
    %v148 = vstv %s147
    %v149 = vmul.f32 %v148, %v69
    %v150 = vmul.f32 %v148, %v70
    %v151 = vmul.f32 %v148, %v71
    %v152 = vmul.f32 %v148, %v72
    %v153 = vadd.f32 %v143, %v149
    %v154 = vadd.f32 %v144, %v150
    %v155 = vadd.f32 %v145, %v151
    %v156 = vadd.f32 %v146, %v152
    %s157 = sld [smem:[#allocation3 + $0x181]]
    %v158 = vstv %s157
    %v159 = vmul.f32 %v158, %v75
    %v160 = vmul.f32 %v158, %v76
    %v161 = vmul.f32 %v158, %v77
    %v162 = vmul.f32 %v158, %v78
    %v163 = vadd.f32 %v153, %v159
    %v164 = vadd.f32 %v154, %v160
    %v165 = vadd.f32 %v155, %v161
    %v166 = vadd.f32 %v156, %v162
    %s167 = sld [smem:[#allocation5 + $0x1]]
    %v168 = vstv %s167
    %v169 = vadd.f32 %v163, %v168
    %v170 = vadd.f32 %v164, %v168
    %v171 = vadd.f32 %v165, %v168
    %v172 = vadd.f32 %v166, %v168
    %v173 = vtanh.pop %v169
    %v174 = vtanh.pop %v170
    %v175 = vtanh.pop %v171
    %v176 = vtanh.pop %v172
    %s177 = sld [smem:[#allocation7 + $0x1]]
    %v178 = vstv %s177
    %v179 = vmul.f32 %v178, %v173
    %v180 = vmul.f32 %v178, %v174
    %v181 = vmul.f32 %v178, %v175
    %v182 = vmul.f32 %v178, %v176
    %v183 = vadd.f32 %v127, %v179
    %v184 = vadd.f32 %v128, %v180
    %v185 = vadd.f32 %v129, %v181
    %v186 = vadd.f32 %v130, %v182
    %s187 = sld [smem:[#allocation3 + $0x2]]
    %v188 = vstv %s187
    %v189 = vmul.f32 %v188, %v57
    %v190 = vmul.f32 %v188, %v58
    %v191 = vmul.f32 %v188, %v59
    %v192 = vmul.f32 %v188, %v60
    %s193 = sld [smem:[#allocation3 + $0x82]]
    %v194 = vstv %s193
    %v195 = vmul.f32 %v194, %v63
    %v196 = vmul.f32 %v194, %v64
    %v197 = vmul.f32 %v194, %v65
    %v198 = vmul.f32 %v194, %v66
    %v199 = vadd.f32 %v189, %v195
    %v200 = vadd.f32 %v190, %v196
    %v201 = vadd.f32 %v191, %v197
    %v202 = vadd.f32 %v192, %v198
    %s203 = sld [smem:[#allocation3 + $0x102]]
    %v204 = vstv %s203
    %v205 = vmul.f32 %v204, %v69
    %v206 = vmul.f32 %v204, %v70
    %v207 = vmul.f32 %v204, %v71
    %v208 = vmul.f32 %v204, %v72
    %v209 = vadd.f32 %v199, %v205
    %v210 = vadd.f32 %v200, %v206
    %v211 = vadd.f32 %v201, %v207
    %v212 = vadd.f32 %v202, %v208
    %s213 = sld [smem:[#allocation3 + $0x182]]
    %v214 = vstv %s213
    %v215 = vmul.f32 %v214, %v75
    %v216 = vmul.f32 %v214, %v76
    %v217 = vmul.f32 %v214, %v77
    %v218 = vmul.f32 %v214, %v78
    %v219 = vadd.f32 %v209, %v215
    %v220 = vadd.f32 %v210, %v216
    %v221 = vadd.f32 %v211, %v217
    %v222 = vadd.f32 %v212, %v218
    %s223 = sld [smem:[#allocation5 + $0x2]]
    %v224 = vstv %s223
    %v225 = vadd.f32 %v219, %v224
    %v226 = vadd.f32 %v220, %v224
    %v227 = vadd.f32 %v221, %v224
    %v228 = vadd.f32 %v222, %v224
    %v229 = vtanh.pop %v225
    %v230 = vtanh.pop %v226
    %v231 = vtanh.pop %v227
    %v232 = vtanh.pop %v228
    %s233 = sld [smem:[#allocation7 + $0x2]]
    %v234 = vstv %s233
    %v235 = vmul.f32 %v234, %v229
    %v236 = vmul.f32 %v234, %v230
    %v237 = vmul.f32 %v234, %v231
    %v238 = vmul.f32 %v234, %v232
    %v239 = vadd.f32 %v183, %v235
    %v240 = vadd.f32 %v184, %v236
    %v241 = vadd.f32 %v185, %v237
    %v242 = vadd.f32 %v186, %v238
    %s243 = sld [smem:[#allocation3 + $0x3]]
    %v244 = vstv %s243
    %v245 = vmul.f32 %v244, %v57
    %v246 = vmul.f32 %v244, %v58
    %v247 = vmul.f32 %v244, %v59
    %v248 = vmul.f32 %v244, %v60
    %s249 = sld [smem:[#allocation3 + $0x83]]
    %v250 = vstv %s249
    %v251 = vmul.f32 %v250, %v63
    %v252 = vmul.f32 %v250, %v64
    %v253 = vmul.f32 %v250, %v65
    %v254 = vmul.f32 %v250, %v66
    %v255 = vadd.f32 %v245, %v251
    %v256 = vadd.f32 %v246, %v252
    %v257 = vadd.f32 %v247, %v253
    %v258 = vadd.f32 %v248, %v254
    %s259 = sld [smem:[#allocation3 + $0x103]]
    %v260 = vstv %s259
    %v261 = vmul.f32 %v260, %v69
    %v262 = vmul.f32 %v260, %v70
    %v263 = vmul.f32 %v260, %v71
    %v264 = vmul.f32 %v260, %v72
    %v265 = vadd.f32 %v255, %v261
    %v266 = vadd.f32 %v256, %v262
    %v267 = vadd.f32 %v257, %v263
    %v268 = vadd.f32 %v258, %v264
    %s269 = sld [smem:[#allocation3 + $0x183]]
    %v270 = vstv %s269
    %v271 = vmul.f32 %v270, %v75
    %v272 = vmul.f32 %v270, %v76
    %v273 = vmul.f32 %v270, %v77
    %v274 = vmul.f32 %v270, %v78
    %v275 = vadd.f32 %v265, %v271
    %v276 = vadd.f32 %v266, %v272
    %v277 = vadd.f32 %v267, %v273
    %v278 = vadd.f32 %v268, %v274
    %s279 = sld [smem:[#allocation5 + $0x3]]
    %v280 = vstv %s279
    %v281 = vadd.f32 %v275, %v280
    %v282 = vadd.f32 %v276, %v280
    %v283 = vadd.f32 %v277, %v280
    %v284 = vadd.f32 %v278, %v280
    %v285 = vtanh.pop %v281
    %v286 = vtanh.pop %v282
    %v287 = vtanh.pop %v283
    %v288 = vtanh.pop %v284
    %s289 = sld [smem:[#allocation7 + $0x3]]
    %v290 = vstv %s289
    %v291 = vmul.f32 %v290, %v285
    %v292 = vmul.f32 %v290, %v286
    %v293 = vmul.f32 %v290, %v287
    %v294 = vmul.f32 %v290, %v288
    %v295 = vadd.f32 %v239, %v291
    %v296 = vadd.f32 %v240, %v292
    %v297 = vadd.f32 %v241, %v293
    %v298 = vadd.f32 %v242, %v294
    %s299 = sld [smem:[#allocation3 + $0x4]]
    %v300 = vstv %s299
    %v301 = vmul.f32 %v300, %v57
    %v302 = vmul.f32 %v300, %v58
    %v303 = vmul.f32 %v300, %v59
    %v304 = vmul.f32 %v300, %v60
    %s305 = sld [smem:[#allocation3 + $0x84]]
    %v306 = vstv %s305
    %v307 = vmul.f32 %v306, %v63
    %v308 = vmul.f32 %v306, %v64
    %v309 = vmul.f32 %v306, %v65
    %v310 = vmul.f32 %v306, %v66
    %v311 = vadd.f32 %v301, %v307
    %v312 = vadd.f32 %v302, %v308
    %v313 = vadd.f32 %v303, %v309
    %v314 = vadd.f32 %v304, %v310
    %s315 = sld [smem:[#allocation3 + $0x104]]
    %v316 = vstv %s315
    %v317 = vmul.f32 %v316, %v69
    %v318 = vmul.f32 %v316, %v70
    %v319 = vmul.f32 %v316, %v71
    %v320 = vmul.f32 %v316, %v72
    %v321 = vadd.f32 %v311, %v317
    %v322 = vadd.f32 %v312, %v318
    %v323 = vadd.f32 %v313, %v319
    %v324 = vadd.f32 %v314, %v320
    %s325 = sld [smem:[#allocation3 + $0x184]]
    %v326 = vstv %s325
    %v327 = vmul.f32 %v326, %v75
    %v328 = vmul.f32 %v326, %v76
    %v329 = vmul.f32 %v326, %v77
    %v330 = vmul.f32 %v326, %v78
    %v331 = vadd.f32 %v321, %v327
    %v332 = vadd.f32 %v322, %v328
    %v333 = vadd.f32 %v323, %v329
    %v334 = vadd.f32 %v324, %v330
    %s335 = sld [smem:[#allocation5 + $0x4]]
    %v336 = vstv %s335
    %v337 = vadd.f32 %v331, %v336
    %v338 = vadd.f32 %v332, %v336
    %v339 = vadd.f32 %v333, %v336
    %v340 = vadd.f32 %v334, %v336
    %v341 = vtanh.pop %v337
    %v342 = vtanh.pop %v338
    %v343 = vtanh.pop %v339
    %v344 = vtanh.pop %v340
    %s345 = sld [smem:[#allocation7 + $0x4]]
    %v346 = vstv %s345
    %v347 = vmul.f32 %v346, %v341
    %v348 = vmul.f32 %v346, %v342
    %v349 = vmul.f32 %v346, %v343
    %v350 = vmul.f32 %v346, %v344
    %v351 = vadd.f32 %v295, %v347
    %v352 = vadd.f32 %v296, %v348
    %v353 = vadd.f32 %v297, %v349
    %v354 = vadd.f32 %v298, %v350
    %s355 = sld [smem:[#allocation3 + $0x5]]
    %v356 = vstv %s355
    %v357 = vmul.f32 %v356, %v57
    %v358 = vmul.f32 %v356, %v58
    %v359 = vmul.f32 %v356, %v59
    %v360 = vmul.f32 %v356, %v60
    %s361 = sld [smem:[#allocation3 + $0x85]]
    %v362 = vstv %s361
    %v363 = vmul.f32 %v362, %v63
    %v364 = vmul.f32 %v362, %v64
    %v365 = vmul.f32 %v362, %v65
    %v366 = vmul.f32 %v362, %v66
    %v367 = vadd.f32 %v357, %v363
    %v368 = vadd.f32 %v358, %v364
    %v369 = vadd.f32 %v359, %v365
    %v370 = vadd.f32 %v360, %v366
    %s371 = sld [smem:[#allocation3 + $0x105]]
    %v372 = vstv %s371
    %v373 = vmul.f32 %v372, %v69
    %v374 = vmul.f32 %v372, %v70
    %v375 = vmul.f32 %v372, %v71
    %v376 = vmul.f32 %v372, %v72
    %v377 = vadd.f32 %v367, %v373
    %v378 = vadd.f32 %v368, %v374
    %v379 = vadd.f32 %v369, %v375
    %v380 = vadd.f32 %v370, %v376
    %s381 = sld [smem:[#allocation3 + $0x185]]
    %v382 = vstv %s381
    %v383 = vmul.f32 %v382, %v75
    %v384 = vmul.f32 %v382, %v76
    %v385 = vmul.f32 %v382, %v77
    %v386 = vmul.f32 %v382, %v78
    %v387 = vadd.f32 %v377, %v383
    %v388 = vadd.f32 %v378, %v384
    %v389 = vadd.f32 %v379, %v385
    %v390 = vadd.f32 %v380, %v386
    %s391 = sld [smem:[#allocation5 + $0x5]]
    %v392 = vstv %s391
    %v393 = vadd.f32 %v387, %v392
    %v394 = vadd.f32 %v388, %v392
    %v395 = vadd.f32 %v389, %v392
    %v396 = vadd.f32 %v390, %v392
    %v397 = vtanh.pop %v393
    %v398 = vtanh.pop %v394
    %v399 = vtanh.pop %v395
    %v400 = vtanh.pop %v396
    %s401 = sld [smem:[#allocation7 + $0x5]]
    %v402 = vstv %s401
    %v403 = vmul.f32 %v402, %v397
    %v404 = vmul.f32 %v402, %v398
    %v405 = vmul.f32 %v402, %v399
    %v406 = vmul.f32 %v402, %v400
    %v407 = vadd.f32 %v351, %v403
    %v408 = vadd.f32 %v352, %v404
    %v409 = vadd.f32 %v353, %v405
    %v410 = vadd.f32 %v354, %v406
    %s411 = sld [smem:[#allocation3 + $0x6]]
    %v412 = vstv %s411
    %v413 = vmul.f32 %v412, %v57
    %v414 = vmul.f32 %v412, %v58
    %v415 = vmul.f32 %v412, %v59
    %v416 = vmul.f32 %v412, %v60
    %s417 = sld [smem:[#allocation3 + $0x86]]
    %v418 = vstv %s417
    %v419 = vmul.f32 %v418, %v63
    %v420 = vmul.f32 %v418, %v64
    %v421 = vmul.f32 %v418, %v65
    %v422 = vmul.f32 %v418, %v66
    %v423 = vadd.f32 %v413, %v419
    %v424 = vadd.f32 %v414, %v420
    %v425 = vadd.f32 %v415, %v421
    %v426 = vadd.f32 %v416, %v422
    %s427 = sld [smem:[#allocation3 + $0x106]]
    %v428 = vstv %s427
    %v429 = vmul.f32 %v428, %v69
    %v430 = vmul.f32 %v428, %v70
    %v431 = vmul.f32 %v428, %v71
    %v432 = vmul.f32 %v428, %v72
    %v433 = vadd.f32 %v423, %v429
    %v434 = vadd.f32 %v424, %v430
    %v435 = vadd.f32 %v425, %v431
    %v436 = vadd.f32 %v426, %v432
    %s437 = sld [smem:[#allocation3 + $0x186]]
    %v438 = vstv %s437
    %v439 = vmul.f32 %v438, %v75
    %v440 = vmul.f32 %v438, %v76
    %v441 = vmul.f32 %v438, %v77
    %v442 = vmul.f32 %v438, %v78
    %v443 = vadd.f32 %v433, %v439
    %v444 = vadd.f32 %v434, %v440
    %v445 = vadd.f32 %v435, %v441
    %v446 = vadd.f32 %v436, %v442
    %s447 = sld [smem:[#allocation5 + $0x6]]
    %v448 = vstv %s447
    %v449 = vadd.f32 %v443, %v448
    %v450 = vadd.f32 %v444, %v448
    %v451 = vadd.f32 %v445, %v448
    %v452 = vadd.f32 %v446, %v448
    %v453 = vtanh.pop %v449
    %v454 = vtanh.pop %v450
    %v455 = vtanh.pop %v451
    %v456 = vtanh.pop %v452
    %s457 = sld [smem:[#allocation7 + $0x6]]
    %v458 = vstv %s457
    %v459 = vmul.f32 %v458, %v453
    %v460 = vmul.f32 %v458, %v454
    %v461 = vmul.f32 %v458, %v455
    %v462 = vmul.f32 %v458, %v456
    %v463 = vadd.f32 %v407, %v459
    %v464 = vadd.f32 %v408, %v460
    %v465 = vadd.f32 %v409, %v461
    %v466 = vadd.f32 %v410, %v462
    %s467 = sld [smem:[#allocation3 + $0x7]]
    %v468 = vstv %s467
    %v469 = vmul.f32 %v468, %v57
    %v470 = vmul.f32 %v468, %v58
    %v471 = vmul.f32 %v468, %v59
    %v472 = vmul.f32 %v468, %v60
    %s473 = sld [smem:[#allocation3 + $0x87]]
    %v474 = vstv %s473
    %v475 = vmul.f32 %v474, %v63
    %v476 = vmul.f32 %v474, %v64
    %v477 = vmul.f32 %v474, %v65
    %v478 = vmul.f32 %v474, %v66
    %v479 = vadd.f32 %v469, %v475
    %v480 = vadd.f32 %v470, %v476
    %v481 = vadd.f32 %v471, %v477
    %v482 = vadd.f32 %v472, %v478
    %s483 = sld [smem:[#allocation3 + $0x107]]
    %v484 = vstv %s483
    %v485 = vmul.f32 %v484, %v69
    %v486 = vmul.f32 %v484, %v70
    %v487 = vmul.f32 %v484, %v71
    %v488 = vmul.f32 %v484, %v72
    %v489 = vadd.f32 %v479, %v485
    %v490 = vadd.f32 %v480, %v486
    %v491 = vadd.f32 %v481, %v487
    %v492 = vadd.f32 %v482, %v488
    %s493 = sld [smem:[#allocation3 + $0x187]]
    %v494 = vstv %s493
    %v495 = vmul.f32 %v494, %v75
    %v496 = vmul.f32 %v494, %v76
    %v497 = vmul.f32 %v494, %v77
    %v498 = vmul.f32 %v494, %v78
    %v499 = vadd.f32 %v489, %v495
    %v500 = vadd.f32 %v490, %v496
    %v501 = vadd.f32 %v491, %v497
    %v502 = vadd.f32 %v492, %v498
    %s503 = sld [smem:[#allocation5 + $0x7]]
    %v504 = vstv %s503
    %v505 = vadd.f32 %v499, %v504
    %v506 = vadd.f32 %v500, %v504
    %v507 = vadd.f32 %v501, %v504
    %v508 = vadd.f32 %v502, %v504
    %v509 = vtanh.pop %v505
    %v510 = vtanh.pop %v506
    %v511 = vtanh.pop %v507
    %v512 = vtanh.pop %v508
    %s513 = sld [smem:[#allocation7 + $0x7]]
    %v514 = vstv %s513
    %v515 = vmul.f32 %v514, %v509
    %v516 = vmul.f32 %v514, %v510
    %v517 = vmul.f32 %v514, %v511
    %v518 = vmul.f32 %v514, %v512
    %v519 = vadd.f32 %v463, %v515
    %v520 = vadd.f32 %v464, %v516
    %v521 = vadd.f32 %v465, %v517
    %v522 = vadd.f32 %v466, %v518
    %s523 = sld [smem:[#allocation3 + $0x8]]
    %v524 = vstv %s523
    %v525 = vmul.f32 %v524, %v57
    %v526 = vmul.f32 %v524, %v58
    %v527 = vmul.f32 %v524, %v59
    %v528 = vmul.f32 %v524, %v60
    %s529 = sld [smem:[#allocation3 + $0x88]]
    %v530 = vstv %s529
    %v531 = vmul.f32 %v530, %v63
    %v532 = vmul.f32 %v530, %v64
    %v533 = vmul.f32 %v530, %v65
    %v534 = vmul.f32 %v530, %v66
    %v535 = vadd.f32 %v525, %v531
    %v536 = vadd.f32 %v526, %v532
    %v537 = vadd.f32 %v527, %v533
    %v538 = vadd.f32 %v528, %v534
    %s539 = sld [smem:[#allocation3 + $0x108]]
    %v540 = vstv %s539
    %v541 = vmul.f32 %v540, %v69
    %v542 = vmul.f32 %v540, %v70
    %v543 = vmul.f32 %v540, %v71
    %v544 = vmul.f32 %v540, %v72
    %v545 = vadd.f32 %v535, %v541
    %v546 = vadd.f32 %v536, %v542
    %v547 = vadd.f32 %v537, %v543
    %v548 = vadd.f32 %v538, %v544
    %s549 = sld [smem:[#allocation3 + $0x188]]
    %v550 = vstv %s549
    %v551 = vmul.f32 %v550, %v75
    %v552 = vmul.f32 %v550, %v76
    %v553 = vmul.f32 %v550, %v77
    %v554 = vmul.f32 %v550, %v78
    %v555 = vadd.f32 %v545, %v551
    %v556 = vadd.f32 %v546, %v552
    %v557 = vadd.f32 %v547, %v553
    %v558 = vadd.f32 %v548, %v554
    %s559 = sld [smem:[#allocation5 + $0x8]]
    %v560 = vstv %s559
    %v561 = vadd.f32 %v555, %v560
    %v562 = vadd.f32 %v556, %v560
    %v563 = vadd.f32 %v557, %v560
    %v564 = vadd.f32 %v558, %v560
    %v565 = vtanh.pop %v561
    %v566 = vtanh.pop %v562
    %v567 = vtanh.pop %v563
    %v568 = vtanh.pop %v564
    %s569 = sld [smem:[#allocation7 + $0x8]]
    %v570 = vstv %s569
    %v571 = vmul.f32 %v570, %v565
    %v572 = vmul.f32 %v570, %v566
    %v573 = vmul.f32 %v570, %v567
    %v574 = vmul.f32 %v570, %v568
    %v575 = vadd.f32 %v519, %v571
    %v576 = vadd.f32 %v520, %v572
    %v577 = vadd.f32 %v521, %v573
    %v578 = vadd.f32 %v522, %v574
    %s579 = sld [smem:[#allocation3 + $0x9]]
    %v580 = vstv %s579
    %v581 = vmul.f32 %v580, %v57
    %v582 = vmul.f32 %v580, %v58
    %v583 = vmul.f32 %v580, %v59
    %v584 = vmul.f32 %v580, %v60
    %s585 = sld [smem:[#allocation3 + $0x89]]
    %v586 = vstv %s585
    %v587 = vmul.f32 %v586, %v63
    %v588 = vmul.f32 %v586, %v64
    %v589 = vmul.f32 %v586, %v65
    %v590 = vmul.f32 %v586, %v66
    %v591 = vadd.f32 %v581, %v587
    %v592 = vadd.f32 %v582, %v588
    %v593 = vadd.f32 %v583, %v589
    %v594 = vadd.f32 %v584, %v590
    %s595 = sld [smem:[#allocation3 + $0x109]]
    %v596 = vstv %s595
    %v597 = vmul.f32 %v596, %v69
    %v598 = vmul.f32 %v596, %v70
    %v599 = vmul.f32 %v596, %v71
    %v600 = vmul.f32 %v596, %v72
    %v601 = vadd.f32 %v591, %v597
    %v602 = vadd.f32 %v592, %v598
    %v603 = vadd.f32 %v593, %v599
    %v604 = vadd.f32 %v594, %v600
    %s605 = sld [smem:[#allocation3 + $0x189]]
    %v606 = vstv %s605
    %v607 = vmul.f32 %v606, %v75
    %v608 = vmul.f32 %v606, %v76
    %v609 = vmul.f32 %v606, %v77
    %v610 = vmul.f32 %v606, %v78
    %v611 = vadd.f32 %v601, %v607
    %v612 = vadd.f32 %v602, %v608
    %v613 = vadd.f32 %v603, %v609
    %v614 = vadd.f32 %v604, %v610
    %s615 = sld [smem:[#allocation5 + $0x9]]
    %v616 = vstv %s615
    %v617 = vadd.f32 %v611, %v616
    %v618 = vadd.f32 %v612, %v616
    %v619 = vadd.f32 %v613, %v616
    %v620 = vadd.f32 %v614, %v616
    %v621 = vtanh.pop %v617
    %v622 = vtanh.pop %v618
    %v623 = vtanh.pop %v619
    %v624 = vtanh.pop %v620
    %s625 = sld [smem:[#allocation7 + $0x9]]
    %v626 = vstv %s625
    %v627 = vmul.f32 %v626, %v621
    %v628 = vmul.f32 %v626, %v622
    %v629 = vmul.f32 %v626, %v623
    %v630 = vmul.f32 %v626, %v624
    %v631 = vadd.f32 %v575, %v627
    %v632 = vadd.f32 %v576, %v628
    %v633 = vadd.f32 %v577, %v629
    %v634 = vadd.f32 %v578, %v630
    %s635 = sld [smem:[#allocation2]]
    %v636 = vstv %s635
    %v637 = vadd.f32 %v631, %v636
    %v638 = vadd.f32 %v632, %v636
    %v639 = vadd.f32 %v633, %v636
    %v640 = vadd.f32 %v634, %v636
    %641 = vst [vmem:[%s5] sm:$0xff] %v637
    %642 = vst [vmem:[%s5 + $0x8] sm:$0xff] %v638
    %643 = vst [vmem:[%s5 + $0x10] sm:$0xff] %v639
    %644 = vst [vmem:[%s5 + $0x18] sm:$0xff] %v640
    // Predicated region
    $region34: #{distributed_net_forward.1} parent=1 // pred_check
      _
    $region35: #{distributed_net_forward.1} parent=1 // pred_check_branch
      %646 = sbr.rel (0) target = $region37
    $region36: #{distributed_net_forward.1} parent=1 // pred_region
      _
    $region37: #{distributed_net_forward.1} parent=1 // pred_fallthru
      _
    // Predicated region
    $region38: #{distributed_net_forward.1} parent=1 // pred_check
      _
    $region39: #{distributed_net_forward.1} parent=1 // pred_check_branch
      %648 = sbr.rel (0) target = $region41
    $region40: #{distributed_net_forward.1} parent=1 // pred_region
      _
    $region41: #{distributed_net_forward.1} parent=1 // pred_fallthru
      _
    %649 = vsyncpa [#allocation4], 1
    %650 = vsyncpa [#allocation6], 1

</llo_original>
